<compile_context>
chip_gen: v6e
topology: v6e:2x2x1
jax: 0.10.0
libtpu: 0.0.40
codegen_flags: <defaults>
</compile_context>

<pallas_src>
import jax
import jax.numpy as jnp
from jax.experimental import pallas as pl
from jax.experimental.pallas import tpu as pltpu

N_FACTORS = 32
LANE = 128
MAX_TILE_B = 32768                    # batch elements per grid step (review: 8K-64K sweet spot)
VMEM_LIMIT_BYTES = 48 * 1024 * 1024   # <= v7x's 64 MiB physical; > v5e's 16 MiB default scoped


def _cdiv(a: int, b: int) -> int:
    return -(-a // b)


def _round_up(x: int, m: int) -> int:
    return _cdiv(x, m) * m


def _tensorcores_per_chip() -> int:
    """Best-effort TensorCores-per-chip query; defaults to 1 (v5e/v6e)."""
    try:
        info = pltpu.get_tpu_info()
        for name in ("tensor_core_count", "num_tensorcores", "num_cores",
                     "tensorcores_per_chip", "core_count"):
            n = getattr(info, name, None)
            if isinstance(n, int) and n > 0:
                return n
    except Exception:
        pass
    return 1


def _pick_tiling(B: int, *, max_tile_b: int = MAX_TILE_B):
    """Pick a lane-aligned tile sized off the batch (big tiles, minimal padding)."""
    n_tc = _tensorcores_per_chip()
    steps = max(_cdiv(B, max_tile_b), 2 if n_tc >= 2 else 1)
    if n_tc >= 2 and steps % 2:
        steps += 1                               # balanced split across both v7x TCs
    tb = _round_up(_cdiv(B, steps), LANE)        # multiple of 128 -> lane-dense blocks
    b_pad = _round_up(B, tb)
    return tb, b_pad, b_pad // tb


def gmf_kernel(u_ref, i_ref, s_ref, b_ref, o_ref):
    # u_ref, i_ref : (tb/G, 128) bf16  gathered embeddings, natural layout
    #                (each row = G=128/F batch elements, F factors each)
    # s_ref        : (128, G)    f32   selector matrix S[l,g] = w[l%F]*(l//F==g), resident
    # b_ref        : (1,)        f32   Linear bias (SMEM)
    # o_ref        : (tb/G, G)   f32   sigmoid(logit) * 5
    u = u_ref[...].astype(jnp.float32)   # cast right after load (v5e has no bf16 VPU)
    v = i_ref[...].astype(jnp.float32)
    prod = u * v                                                   # full-lane VPU
    # Weighted per-element reduce on the otherwise-idle MXU (frees VALU slots).
    logit = jnp.dot(prod, s_ref[...], preferred_element_type=jnp.float32)  # (tb/G, G)
    logit = logit + b_ref[0]
    o_ref[...] = jax.nn.sigmoid(logit) * 5.0                       # EUP


def gmf_forward(users, items, params, *, max_tile_b=MAX_TILE_B):
    """Forward of GMF (for_NeuMF=False). users/items are 1-based int32 ids."""
    B = users.shape[0]
    F = params["user_embed"].shape[1]
    assert LANE % F == 0, "n_factors must divide 128 for the lane-packed layout"
    G = LANE // F                                   # batch elements per 128-lane row

    tb, b_pad, num_tiles = _pick_tiling(B, max_tile_b=max_tile_b)
    rows_per_tile = tb // G

    # 0-based ids, padded to a tile multiple (pad rows gather row 0, dropped later).
    # NOTE: jnp.take clips out-of-range ids rather than raising like nn.Embedding.
    u_idx = jnp.pad(users - 1, (0, b_pad - B))
    i_idx = jnp.pad(items - 1, (0, b_pad - B))

    # Gather bf16 rows and keep the natural contiguous layout; the reshape to
    # (b_pad/G, 128) is metadata-only (no transpose / extra HBM round trip).
    u_emb = jnp.take(params["user_embed"], u_idx, axis=0).reshape(b_pad // G, LANE)
    i_emb = jnp.take(params["item_embed"], i_idx, axis=0).reshape(b_pad // G, LANE)

    # Fold the Linear weight into a (128, G) selector matrix (built once, resident).
    w = params["linear_w"].reshape(F).astype(jnp.float32)
    lane = jnp.arange(LANE)
    sel = jnp.where((lane[:, None] // F) == jnp.arange(G)[None, :],
                    w[lane % F][:, None], 0.0).astype(jnp.float32)     # (128, G)
    bias = params["linear_b"].reshape(1).astype(jnp.float32)           # (1,)

    out = pl.pallas_call(
        gmf_kernel,
        out_shape=jax.ShapeDtypeStruct((b_pad // G, G), jnp.float32),
        grid=(num_tiles,),
        in_specs=[
            pl.BlockSpec((rows_per_tile, LANE), lambda t: (t, 0)),      # user embeds
            pl.BlockSpec((rows_per_tile, LANE), lambda t: (t, 0)),      # item embeds
            pl.BlockSpec((LANE, G), lambda t: (0, 0)),                  # selector (resident)
            pl.BlockSpec(memory_space=pltpu.MemorySpace.SMEM),          # bias (SMEM)
        ],
        out_specs=pl.BlockSpec((rows_per_tile, G), lambda t: (t, 0)),
        compiler_params=pltpu.CompilerParams(
            dimension_semantics=("parallel",),
            vmem_limit_bytes=VMEM_LIMIT_BYTES),
    )(u_emb, i_emb, sel, bias)

    # Row r, column g of the output is batch element r*G + g -> flat row-major.
    return out.reshape(-1)[:B]   # matches .view(-1)


def init_params(key, n_users, n_items, n_factors=N_FACTORS, table_dtype=jnp.bfloat16):
    k1, k2, k3, k4 = jax.random.split(key, 4)
    # nn.init.normal_(std=0.01) for both embedding tables; bf16 by default to
    # halve HBM traffic of the dominant stream (pass float32 for exact fidelity).
    user_embed = (0.01 * jax.random.normal(k1, (n_users, n_factors), jnp.float32)
                  ).astype(table_dtype)
    item_embed = (0.01 * jax.random.normal(k2, (n_items, n_factors), jnp.float32)
                  ).astype(table_dtype)
    # xavier_normal_ with gain = calculate_gain('sigmoid') = 1.0 for Linear(F, 1)
    fan_in, fan_out = n_factors, 1
    std = (2.0 / (fan_in + fan_out)) ** 0.5
    linear_w = std * jax.random.normal(k3, (1, n_factors), jnp.float32)
    # bias keeps PyTorch Linear default: U(-1/sqrt(fan_in), 1/sqrt(fan_in))
    bound = 1.0 / (fan_in ** 0.5)
    linear_b = jax.random.uniform(k4, (1,), jnp.float32, -bound, bound)
    return {
        "user_embed": user_embed,
        "item_embed": item_embed,
        "linear_w": linear_w,
        "linear_b": linear_b,
    }


def gmf_reference(users, items, params):
    u = jnp.take(params["user_embed"], users - 1, axis=0).astype(jnp.float32)
    i = jnp.take(params["item_embed"], items - 1, axis=0).astype(jnp.float32)
    prod = u * i
    logit = jnp.sum(prod * params["linear_w"].astype(jnp.float32), axis=-1)
    logit = logit + params["linear_b"][0]
    return jax.nn.sigmoid(logit) * 5.0


if __name__ == "__main__":
    key = jax.random.PRNGKey(0)
    n_users, n_items, batch = 20, 30, 8

    pkey, ukey, ikey = jax.random.split(key, 3)
    params = init_params(pkey, n_users, n_items, N_FACTORS)

    # 1-based ids, as the module expects ("Convert input ... to 0-based indices")
    users = jax.random.randint(ukey, (batch,), 1, n_users + 1, dtype=jnp.int32)
    items = jax.random.randint(ikey, (batch,), 1, n_items + 1, dtype=jnp.int32)

    out = jax.jit(gmf_forward)(users, items, params)
    out = jax.block_until_ready(out)

    ref = gmf_reference(users, items, params)
    assert out.shape == (batch,)
    assert jnp.allclose(out, ref, atol=1e-4, rtol=1e-4), (out, ref)

    print("KERNEL_OK")
</pallas_src>

<mosaic_0001>
module attributes {stable_mosaic.version = 11 : i64} {
  func.func @gmf_kernel(%arg0: i32, %arg1: memref<32x128xbf16, #tpu.memory_space<vmem>>, %arg2: memref<32x128xbf16, #tpu.memory_space<vmem>>, %arg3: memref<128x4xf32, #tpu.memory_space<vmem>>, %arg4: memref<1xf32, #tpu.memory_space<smem>>, %arg5: memref<32x4xf32, #tpu.memory_space<vmem>>) attributes {dimension_semantics = [#tpu.dimension_semantics<parallel>], iteration_bounds = array<i64: 1>, scalar_prefetch = 0 : i64, scratch_operands = 0 : i64, tpu.core_type = #tpu.core_type<tc>, window_params = [{transform_indices = @transform_0, window_bounds = array<i64: 32, 128>}, {transform_indices = @transform_1, window_bounds = array<i64: 32, 128>}, {pipeline_mode = #tpu.pipeline_mode<synchronous>, transform_indices = @transform_2, window_bounds = array<i64: 128, 4>}, {transform_indices = @transform_3, window_bounds = array<i64: 1>}, {transform_indices = @transform_4, window_bounds = array<i64: 32, 4>}]} {
    %c0 = arith.constant 0 : index
    %c0_0 = arith.constant 0 : index
    %0 = vector.load %arg1[%c0, %c0_0] : memref<32x128xbf16, #tpu.memory_space<vmem>>, vector<32x128xbf16>
    %1 = arith.extf %0 : vector<32x128xbf16> to vector<32x128xf32>
    %c0_1 = arith.constant 0 : index
    %c0_2 = arith.constant 0 : index
    %2 = vector.load %arg2[%c0_1, %c0_2] : memref<32x128xbf16, #tpu.memory_space<vmem>>, vector<32x128xbf16>
    %3 = arith.extf %2 : vector<32x128xbf16> to vector<32x128xf32>
    %4 = arith.mulf %1, %3 : vector<32x128xf32>
    %c0_3 = arith.constant 0 : index
    %c0_4 = arith.constant 0 : index
    %5 = vector.load %arg3[%c0_3, %c0_4] : memref<128x4xf32, #tpu.memory_space<vmem>>, vector<128x4xf32>
    %cst = arith.constant dense<0.000000e+00> : vector<32x4xf32>
    %6 = tpu.matmul %4, %5, %cst {dimension_numbers = #tpu.dot_dimension_numbers<[1], [0], [0], [1], [0, 0, 1, 1], [], []>} : vector<32x128xf32>, vector<128x4xf32>, vector<32x4xf32> -> vector<32x4xf32>
    %c0_5 = arith.constant 0 : index
    %7 = memref.load %arg4[%c0_5] : memref<1xf32, #tpu.memory_space<smem>>
    %8 = vector.broadcast %7 : f32 to vector<32x4xf32>
    %9 = arith.addf %6, %8 : vector<32x4xf32>
    %10 = arith.negf %9 : vector<32x4xf32>
    %11 = math.exp %10 : vector<32x4xf32>
    %cst_6 = arith.constant 1.000000e+00 : f32
    %12 = vector.broadcast %cst_6 : f32 to vector<32x4xf32>
    %13 = arith.addf %12, %11 : vector<32x4xf32>
    %14 = arith.divf %12, %13 : vector<32x4xf32>
    %cst_7 = arith.constant 5.000000e+00 : f32
    %15 = vector.broadcast %cst_7 : f32 to vector<32x4xf32>
    %16 = arith.mulf %14, %15 : vector<32x4xf32>
    %c0_8 = arith.constant 0 : index
    %c0_9 = arith.constant 0 : index
    %17 = vector.load %arg5[%c0_8, %c0_9] : memref<32x4xf32, #tpu.memory_space<vmem>>, vector<32x4xf32>
    tpu.vector_store %arg5[%c0_8, %c0_9], %16 {strides = array<i32>} : memref<32x4xf32, #tpu.memory_space<vmem>>, vector<32x4xf32>,
    return
  }
  func.func @transform_0(%arg0: i32) -> (i32, i32) {
    %c0_i32 = arith.constant 0 : i32
    %c0_i32_0 = arith.constant 0 : i32
    return %arg0, %c0_i32 : i32, i32
  }
  func.func @transform_1(%arg0: i32) -> (i32, i32) {
    %c0_i32 = arith.constant 0 : i32
    %c0_i32_0 = arith.constant 0 : i32
    return %arg0, %c0_i32 : i32, i32
  }
  func.func @transform_2(%arg0: i32) -> (i32, i32) {
    %c0_i32 = arith.constant 0 : i32
    %c0_i32_0 = arith.constant 0 : i32
    %c0_i32_1 = arith.constant 0 : i32
    return %c0_i32, %c0_i32_0 : i32, i32
  }
  func.func @transform_3(%arg0: i32) -> i32 {
    %c0_i32 = arith.constant 0 : i32
    %c0_i32_0 = arith.constant 0 : i32
    return %c0_i32 : i32
  }
  func.func @transform_4(%arg0: i32) -> (i32, i32) {
    %c0_i32 = arith.constant 0 : i32
    %c0_i32_0 = arith.constant 0 : i32
    return %arg0, %c0_i32 : i32, i32
  }
}

</mosaic_0001>

<llo_original>
// kernel: gmf_forward.1
$region0: #{gmf_forward.1}
  #allocation0 [shape = 'u32[]', space=smem, size = 0x4, offset = 0x4, fixed_abs, tag = 'smem constant byte address 0x4 - core index']
  #allocation1 [shape = 'u32[144,128]{1,0:T(1,128)}', space=vmem, size = 0x12000, scoped, tag = 'internal scratch']
  #allocation2 [shape = 'f32[1]{0:T(128)S(6)}', space=smem, size = 0x200, scoped, tag = 'scoped memory for gmf_forward.1']
  %s0 = inlined_call_operand.vmem [shape: bf16[32,128], index: 0, kind: input, shape index: {}]
  %s1 = inlined_call_operand.vmem [shape: bf16[32,128], index: 1, kind: input, shape index: {}]
  %s2 = inlined_call_operand.vmem [shape: f32[128,4], index: 2, kind: input, shape index: {}]
  %s3 = inlined_call_operand.<no memory space> [shape: f32[1], index: 3, kind: input, shape index: {}]
  %s4 = inlined_call_operand.vmem [shape: f32[32,4], index: 4, kind: output, shape index: {}]
  %s5 = sld [smem:[#allocation0]]
  $region26: #{gmf_forward.1} parent=0
    _
  %s7 = ssub.s32 1, %s5
  %s8 = scalar_select 0, %s7, %s5
  %9 = sst [smem:[#allocation2]] %s3
  // Predicated region
  $region2: #{gmf_forward.1} parent=0 // pred_check
    _
  $region3: #{gmf_forward.1} parent=0 // pred_check_branch
    %11 = sbr.rel (0) target = $region5
  $region4: #{gmf_forward.1} parent=0 // pred_region
    _
  $region5: #{gmf_forward.1} parent=0 // pred_fallthru
    _
  // Predicated region
  $region6: #{gmf_forward.1} parent=0 // pred_check
    _
  $region7: #{gmf_forward.1} parent=0 // pred_check_branch
    %13 = sbr.rel (0) target = $region9
  $region8: #{gmf_forward.1} parent=0 // pred_region
    _
  $region9: #{gmf_forward.1} parent=0 // pred_fallthru
    _
  // Predicated region
  $region10: #{gmf_forward.1} parent=0 // pred_check
    _
  $region11: #{gmf_forward.1} parent=0 // pred_check_branch
    %15 = sbr.rel (0) target = $region13
  $region12: #{gmf_forward.1} parent=0 // pred_region
    _
  $region13: #{gmf_forward.1} parent=0 // pred_fallthru
    _
  // Predicated region
  $region14: #{gmf_forward.1} parent=0 // pred_check
    _
  $region15: #{gmf_forward.1} parent=0 // pred_check_branch
    %17 = sbr.rel (0) target = $region17
  $region16: #{gmf_forward.1} parent=0 // pred_region
    _
  $region17: #{gmf_forward.1} parent=0 // pred_fallthru
    _
  %v18 = vld [vmem:[%s0] sm:$0xf]
  %v19 = vld [vmem:[%s0 + $0x4] sm:$0xf]
  %v20 = vld [vmem:[%s0 + $0x8] sm:$0xf]
  %v21 = vld [vmem:[%s0 + $0xc] sm:$0xf]
  %v22 = vunpack.c.l.bf16 %v18
  %v23 = vunpack.c.l.bf16 %v19
  %v24 = vunpack.c.l.bf16 %v20
  %v25 = vunpack.c.l.bf16 %v21
  %v26 = vld [vmem:[%s1] sm:$0xf]
  %v27 = vld [vmem:[%s1 + $0x4] sm:$0xf]
  %v28 = vld [vmem:[%s1 + $0x8] sm:$0xf]
  %v29 = vld [vmem:[%s1 + $0xc] sm:$0xf]
  %v30 = vunpack.c.l.bf16 %v26
  %v31 = vunpack.c.l.bf16 %v27
  %v32 = vunpack.c.l.bf16 %v28
  %v33 = vunpack.c.l.bf16 %v29
  %v34 = vmul.f32 %v22, %v30
  %v35 = vmul.f32 %v23, %v31
  %v36 = vmul.f32 %v24, %v32
  %v37 = vmul.f32 %v25, %v33
  %v38 = vld [vmem:[%s2] sm:$0xff]
  %v39 = vld [vmem:[%s2 + $0x8] sm:$0xff]
  %v40 = vld [vmem:[%s2 + $0x10] sm:$0xff]
  %v41 = vld [vmem:[%s2 + $0x18] sm:$0xff]
  %v42 = vld [vmem:[%s2 + $0x20] sm:$0xff]
  %v43 = vld [vmem:[%s2 + $0x28] sm:$0xff]
  %v44 = vld [vmem:[%s2 + $0x30] sm:$0xff]
  %v45 = vld [vmem:[%s2 + $0x38] sm:$0xff]
  %v46 = vld [vmem:[%s2 + $0x40] sm:$0xff]
  %v47 = vld [vmem:[%s2 + $0x48] sm:$0xff]
  %v48 = vld [vmem:[%s2 + $0x50] sm:$0xff]
  %v49 = vld [vmem:[%s2 + $0x58] sm:$0xff]
  %v50 = vld [vmem:[%s2 + $0x60] sm:$0xff]
  %v51 = vld [vmem:[%s2 + $0x68] sm:$0xff]
  %v52 = vld [vmem:[%s2 + $0x70] sm:$0xff]
  %v53 = vld [vmem:[%s2 + $0x78] sm:$0xff]
  %s54 = sld [smem:[#allocation2]]
  %v55 = vstv %s54
  %56 = vmatprep.subr.mxu0 0.0
  %57 = vmatpush1.msra.mxu0 %v53
  %58 = vmatprep.subr.mxu0 0.0
  %59 = vmatpush1.msra.mxu0 %v52
  %60 = vmatprep.subr.mxu0 0.0
  %61 = vmatpush1.msra.mxu0 %v51
  %62 = vmatprep.subr.mxu0 0.0
  %63 = vmatpush1.msra.mxu0 %v50
  %64 = vmatprep.subr.mxu0 0.0
  %65 = vmatpush1.msra.mxu0 %v49
  %66 = vmatprep.subr.mxu0 0.0
  %67 = vmatpush1.msra.mxu0 %v48
  %68 = vmatprep.subr.mxu0 0.0
  %69 = vmatpush1.msra.mxu0 %v47
  %70 = vmatprep.subr.mxu0 0.0
  %71 = vmatpush1.msra.mxu0 %v46
  %72 = vmatprep.subr.mxu0 0.0
  %73 = vmatpush1.msra.mxu0 %v45
  %74 = vmatprep.subr.mxu0 0.0
  %75 = vmatpush1.msra.mxu0 %v44
  %76 = vmatprep.subr.mxu0 0.0
  %77 = vmatpush1.msra.mxu0 %v43
  %78 = vmatprep.subr.mxu0 0.0
  %79 = vmatpush1.msra.mxu0 %v42
  %80 = vmatprep.subr.mxu0 0.0
  %81 = vmatpush1.msra.mxu0 %v41
  %82 = vmatprep.subr.mxu0 0.0
  %83 = vmatpush1.msra.mxu0 %v40
  %84 = vmatprep.subr.mxu0 0.0
  %85 = vmatpush1.msra.mxu0 %v39
  %86 = vmatprep.subr.mxu0 0.0
  %87 = vmatpush1.msra.mxu0 %v38
  %88 = vmatprep.subr.mxu0 0.0
  %89 = vmatpush2.msra.mxu0 0.0
  %90 = vmatprep.subr.mxu0 0.0
  %91 = vmatpush2.msra.mxu0 0.0
  %92 = vmatprep.subr.mxu0 0.0
  %93 = vmatpush2.msra.mxu0 0.0
  %94 = vmatprep.subr.mxu0 0.0
  %95 = vmatpush2.msra.mxu0 0.0
  %96 = vmatprep.subr.mxu0 0.0
  %97 = vmatpush2.msra.mxu0 0.0
  %98 = vmatprep.subr.mxu0 0.0
  %99 = vmatpush2.msra.mxu0 0.0
  %100 = vmatprep.subr.mxu0 0.0
  %101 = vmatpush2.msra.mxu0 0.0
  %102 = vmatprep.subr.mxu0 0.0
  %103 = vmatpush2.msra.mxu0 0.0
  %104 = vmatprep.subr.mxu0 0.0
  %105 = vmatpush2.msra.mxu0 0.0
  %106 = vmatprep.subr.mxu0 0.0
  %107 = vmatpush2.msra.mxu0 0.0
  %108 = vmatprep.subr.mxu0 0.0
  %109 = vmatpush2.msra.mxu0 0.0
  %110 = vmatprep.subr.mxu0 0.0
  %111 = vmatpush2.msra.mxu0 0.0
  %112 = vmatprep.subr.mxu0 0.0
  %113 = vmatpush2.msra.mxu0 0.0
  %114 = vmatprep.subr.mxu0 0.0
  %115 = vmatpush2.msra.mxu0 0.0
  %116 = vmatprep.subr.mxu0 0.0
  %117 = vmatpush2.msra.mxu0 0.0
  %118 = vmatprep.subr.mxu0 0.0
  %119 = vmatpush2.msra.mxu0 0.0
  %120 = vmatprep.mubr.f32.mxu0 0.0
  %121 = vmatmul.mubr.f32.gmra.mxu0 %v34
  %v122 = vpop.f32.mrf.mxu0
  %v123 = vadd.f32 %v55, %v122
  %v124 = vpop.f32.mrf.mxu0
  %125 = vmatprep.mubr.f32.mxu0 0.0
  %126 = vmatmul.mubr.f32.gmra.mxu0 %v35
  %v127 = vpop.f32.mrf.mxu0
  %v128 = vadd.f32 %v55, %v127
  %v129 = vpop.f32.mrf.mxu0
  %130 = vmatprep.mubr.f32.mxu0 0.0
  %131 = vmatmul.mubr.f32.gmra.mxu0 %v36
  %v132 = vpop.f32.mrf.mxu0
  %v133 = vadd.f32 %v55, %v132
  %v134 = vpop.f32.mrf.mxu0
  %135 = vmatprep.mubr.f32.mxu0 0.0
  %136 = vmatmul.mubr.f32.gmra.mxu0 %v37
  %v137 = vpop.f32.mrf.mxu0
  %v138 = vadd.f32 %v55, %v137
  %v139 = vpop.f32.mrf.mxu0
  %140 = vdwg.mxu0
  %v141 = vxor.u32 %v123, 2147483648
  %v142 = vxor.u32 %v128, 2147483648
  %v143 = vxor.u32 %v133, 2147483648
  %v144 = vxor.u32 %v138, 2147483648
  %v145 = vmul.f32 %v141, 1.442695
  %v146 = vpow.pop %v145
  %v147 = vmul.f32 %v142, 1.442695
  %v148 = vpow.pop %v147
  %v149 = vmul.f32 %v143, 1.442695
  %v150 = vpow.pop %v149
  %v151 = vmul.f32 %v144, 1.442695
  %v152 = vpow.pop %v151
  %v153 = vadd.f32 %v146, 1.0
  %v154 = vadd.f32 %v148, 1.0
  %v155 = vadd.f32 %v150, 1.0
  %v156 = vadd.f32 %v152, 1.0
  %v157 = vrcp.pop %v153
  %v158 = vmul.f32 1.0, %v157
  %v159 = vrcp.pop %v154
  %v160 = vmul.f32 1.0, %v159
  %v161 = vrcp.pop %v155
  %v162 = vmul.f32 1.0, %v161
  %v163 = vrcp.pop %v156
  %v164 = vmul.f32 1.0, %v163
  %v165 = vmul.f32 %v158, 5.0
  %v166 = vmul.f32 %v160, 5.0
  %v167 = vmul.f32 %v162, 5.0
  %v168 = vmul.f32 %v164, 5.0
  %vm169 = vcmask 31744
  %170 = vst.msk [vmem:[%s4] sm:$0xff] %vm169, %v165
  %171 = vst.msk [vmem:[%s4 + $0x8] sm:$0xff] %vm169, %v166
  %172 = vst.msk [vmem:[%s4 + $0x10] sm:$0xff] %vm169, %v167
  %173 = vst.msk [vmem:[%s4 + $0x18] sm:$0xff] %vm169, %v168
  // Predicated region
  $region18: #{gmf_forward.1} parent=0 // pred_check
    _
  $region19: #{gmf_forward.1} parent=0 // pred_check_branch
    %175 = sbr.rel (0) target = $region21
  $region20: #{gmf_forward.1} parent=0 // pred_region
    _
  $region21: #{gmf_forward.1} parent=0 // pred_fallthru
    _
  // Predicated region
  $region22: #{gmf_forward.1} parent=0 // pred_check
    _
  $region23: #{gmf_forward.1} parent=0 // pred_check_branch
    %177 = sbr.rel (0) target = $region25
  $region24: #{gmf_forward.1} parent=0 // pred_region
    _
  $region25: #{gmf_forward.1} parent=0 // pred_fallthru
    _

</llo_original>
